<compile_context>
chip_gen: v6e
topology: v6e:2x2x1
jax: 0.10.0
libtpu: 0.0.40
codegen_flags: <defaults>
</compile_context>

<pallas_src>
import functools

import jax
import jax.numpy as jnp
from jax.experimental import pallas as pl
from jax.experimental.pallas import tpu as pltpu


def _lsce_kernel(logits_ref, target_ref, out_ref, *, n_valid):
    """Per row tile, writes one (1, 8, 128) block:
         sublanes 0..3 : sum_i ( -sum_c log_softmax(x_i)_c )      (smooth partial)
         sublanes 4..7 : sum_i ( -log_softmax(x_i)_{target_i} )   (nll partial)
       summed over the valid rows of this tile, broadcast across lanes.
    """
    i = pl.program_id(0)

    x = logits_ref[...].astype(jnp.float32)              # (TN, C)
    tn, c = x.shape

    # Numerically stable logsumexp along the class (lane) axis.
    m = jnp.max(x, axis=-1, keepdims=True)                # (TN, 1)
    lse = jnp.log(jnp.sum(jnp.exp(x - m), axis=-1, keepdims=True)) + m

    # Per-row sums without materializing logp = x - lse:
    #   smooth_row = -sum_c (x - lse) = C*lse - sum_c x
    #   nll_row    = -(x_tgt - lse)   = lse - x_tgt
    sum_x = jnp.sum(x, axis=-1, keepdims=True)            # (TN, 1)
    col = jax.lax.broadcasted_iota(jnp.int32, (tn, c), 1)
    tgt = target_ref[...]                                  # (TN, 1) int32
    x_tgt = jnp.sum(jnp.where(col == tgt, x, jnp.float32(0.0)),
                    axis=-1, keepdims=True)                # (TN, 1)

    smooth_rows = jnp.float32(c) * lse - sum_x
    nll_rows = lse - x_tgt

    # Rows past n_valid (grid overrun on the last tile) hold undefined data;
    # per-row results for them are garbage, but rows are independent, so a
    # select (not a multiply -> no 0*NaN) removes them before the cross-row sum.
    row = jax.lax.broadcasted_iota(jnp.int32, (tn, 1), 0) + i * tn
    row_valid = row < n_valid
    smooth_sum = jnp.sum(jnp.where(row_valid, smooth_rows, jnp.float32(0.0)))
    nll_sum = jnp.sum(jnp.where(row_valid, nll_rows, jnp.float32(0.0)))

    # Lane-dense (8,128) store: smooth partial in sublanes 0-3, nll in 4-7.
    sub = jax.lax.broadcasted_iota(jnp.int32, (8, 128), 0)
    out_ref[0] = jnp.where(sub < 4, smooth_sum, nll_sum)


def label_smoothing_cross_entropy(logits, target, *, eps=0.1, reduction="mean",
                                  tile_n=None):
    """logits: (N, C) float (f32 or bf16); target: (N,) int. Matches the PyTorch module."""
    n, c = logits.shape
    itemsize = jnp.dtype(logits.dtype).itemsize
    row_align = 16 if itemsize < 4 else 8

    # Generation-aware VMEM budget (v5e/v6e: 128 MiB, v7x: 64 MiB per TC).
    try:
        vmem_cap = int(pltpu.get_tpu_info().vmem_capacity_bytes)
    except Exception:
        vmem_cap = 64 << 20                                  # conservative fallback
    ws_budget = min(int(vmem_cap * 0.65), 96 << 20)          # working-set budget

    # VMEM bytes per tile row:
    #   2x double-buffered logits rows            : 2 * c * itemsize
    #   2x double-buffered (TN,1) int32 targets   : 2 * 512   (lane-padded to 128)
    #   f32 intermediates (cast/exp/iota/select)  : ~16 * c
    per_row = 2 * c * itemsize + 1024 + 16 * c

    if tile_n is None:
        tile_n = ws_budget // per_row
    tile_n = max(row_align, (int(tile_n) // row_align) * row_align)

    # Keep >= 2 grid tiles when the batch allows it: the grid axis is "parallel"
    # and v7x has 2 TensorCores per chip.
    if n >= 2 * row_align:
        half = ((-(-n // 2)) + row_align - 1) // row_align * row_align
        tile_n = min(tile_n, half)
    elif tile_n >= n:
        tile_n = n                                           # single full-extent tile

    num_tiles = -(-n // tile_n)

    target_2d = target.astype(jnp.int32).reshape(n, 1)       # tiny; no logits copy/pad

    kernel = functools.partial(_lsce_kernel, n_valid=n)

    needed = tile_n * per_row + (1 << 20)
    vmem_limit = int(min(max(needed * 5 // 4, 8 << 20), int(vmem_cap * 0.75)))

    cost = pl.CostEstimate(
        flops=int(6 * n * c),
        transcendentals=int(n * c + n),
        bytes_accessed=int(n * c * itemsize + n * 4 + num_tiles * 8 * 128 * 4),
    )

    parts = pl.pallas_call(
        kernel,
        out_shape=jax.ShapeDtypeStruct((num_tiles, 8, 128), jnp.float32),
        grid_spec=pltpu.PrefetchScalarGridSpec(
            num_scalar_prefetch=0,
            grid=(num_tiles,),
            in_specs=[
                # Class axis unpadded: last block dim == full array dim (legal
                # even when c % 128 != 0); Mosaic masks partial lanes in the
                # axis=-1 reductions (validated against the reference below).
                pl.BlockSpec((tile_n, c), lambda i: (i, 0)),
                pl.BlockSpec((tile_n, 1), lambda i: (i, 0)),
            ],
            out_specs=pl.BlockSpec((1, 8, 128), lambda i: (i, 0, 0)),
        ),
        compiler_params=pltpu.CompilerParams(
            dimension_semantics=("parallel",),
            vmem_limit_bytes=vmem_limit),
        cost_estimate=cost,
    )(logits, target_2d)

    # Tiny final reduction over per-tile partials in plain JAX.
    smooth_sum = jnp.sum(parts[:, 0, 0])
    nll_sum = jnp.sum(parts[:, 4, 0])

    if reduction == "sum":
        smooth, nll = smooth_sum, nll_sum
    elif reduction == "mean":
        smooth, nll = smooth_sum / n, nll_sum / n
    else:
        raise NotImplementedError("only 'mean' and 'sum' reductions supported")
        # TODO(synk): reduction='none' would need a per-row vector output spec.

    return smooth * eps / c + (1.0 - eps) * nll


def _reference(logits, target, eps=0.1, reduction="mean"):
    c = logits.shape[-1]
    logp = jax.nn.log_softmax(logits, axis=-1)
    loss = -jnp.sum(logp, axis=-1)
    nll = -jnp.take_along_axis(logp, target[:, None], axis=-1)[:, 0]
    if reduction == "mean":
        loss, nll = jnp.mean(loss), jnp.mean(nll)
    else:
        loss, nll = jnp.sum(loss), jnp.sum(nll)
    return loss * eps / c + (1.0 - eps) * nll


if __name__ == "__main__":
    key = jax.random.PRNGKey(0)
    k1, k2 = jax.random.split(key)
    N, C = 8, 32                       # small shapes: batch=8, classes=32
    logits = jax.random.normal(k1, (N, C), dtype=jnp.float32)
    target = jax.random.randint(k2, (N,), 0, C, dtype=jnp.int32)

    out = label_smoothing_cross_entropy(logits, target, eps=0.1, reduction="mean")
    out = jax.block_until_ready(out)
    ref = _reference(logits, target, eps=0.1, reduction="mean")
    assert jnp.allclose(out, ref, atol=1e-4, rtol=1e-4), (out, ref)

    # 'sum' reduction path.
    out_s = jax.block_until_ready(
        label_smoothing_cross_entropy(logits, target, eps=0.1, reduction="sum"))
    ref_s = _reference(logits, target, eps=0.1, reduction="sum")
    assert jnp.allclose(out_s, ref_s, atol=1e-3, rtol=1e-4), (out_s, ref_s)

    # Multi-tile + grid-overrun path (non-divisible N, non-128-aligned C).
    k3, k4 = jax.random.split(k2)
    N2, C2 = 50, 20
    logits2 = jax.random.normal(k3, (N2, C2), dtype=jnp.float32)
    target2 = jax.random.randint(k4, (N2,), 0, C2, dtype=jnp.int32)
    out2 = jax.block_until_ready(
        label_smoothing_cross_entropy(logits2, target2, eps=0.1, reduction="mean"))
    ref2 = _reference(logits2, target2, eps=0.1, reduction="mean")
    assert jnp.allclose(out2, ref2, atol=1e-4, rtol=1e-4), (out2, ref2)

    print("KERNEL_OK")
</pallas_src>

<mosaic_0001>
module attributes {stable_mosaic.version = 11 : i64} {
  func.func @_lsce_kernel(%arg0: i32, %arg1: memref<8x32xf32, #tpu.memory_space<vmem>>, %arg2: memref<8x1xi32, #tpu.memory_space<vmem>>, %arg3: memref<1x8x128xf32, #tpu.memory_space<vmem>>) attributes {dimension_semantics = [#tpu.dimension_semantics<parallel>], iteration_bounds = array<i64: 1>, scalar_prefetch = 0 : i64, scratch_operands = 0 : i64, tpu.core_type = #tpu.core_type<tc>, window_params = [{transform_indices = @transform_0, window_bounds = array<i64: 8, 32>}, {transform_indices = @transform_1, window_bounds = array<i64: 8, 1>}, {transform_indices = @transform_2, window_bounds = array<i64: 1, 8, 128>}]} {
    %c0 = arith.constant 0 : index
    %c0_0 = arith.constant 0 : index
    %0 = vector.load %arg1[%c0, %c0_0] : memref<8x32xf32, #tpu.memory_space<vmem>>, vector<8x32xf32>
    %cst = arith.constant dense<0xFF800000> : vector<8xf32>
    %1 = vector.multi_reduction <maximumf>, %0, %cst [1] : vector<8x32xf32> to vector<8xf32>
    %2 = vector.shape_cast %1 : vector<8xf32> to vector<8x1xf32>
    %3 = vector.broadcast %2 : vector<8x1xf32> to vector<8x32xf32>
    %4 = arith.subf %0, %3 : vector<8x32xf32>
    %5 = math.exp %4 : vector<8x32xf32>
    %cst_1 = arith.constant dense<0.000000e+00> : vector<8xf32>
    %6 = vector.multi_reduction <add>, %5, %cst_1 [1] : vector<8x32xf32> to vector<8xf32>
    %7 = vector.shape_cast %6 : vector<8xf32> to vector<8x1xf32>
    %8 = math.log %7 : vector<8x1xf32>
    %9 = arith.addf %8, %2 : vector<8x1xf32>
    %cst_2 = arith.constant dense<0.000000e+00> : vector<8xf32>
    %10 = vector.multi_reduction <add>, %0, %cst_2 [1] : vector<8x32xf32> to vector<8xf32>
    %11 = vector.shape_cast %10 : vector<8xf32> to vector<8x1xf32>
    %12 = tpu.iota {dimensions = array<i32: 1>} : vector<8x32xi32>
    %c0_3 = arith.constant 0 : index
    %c0_4 = arith.constant 0 : index
    %13 = vector.load %arg2[%c0_3, %c0_4] : memref<8x1xi32, #tpu.memory_space<vmem>>, vector<8x1xi32>
    %14 = vector.broadcast %13 : vector<8x1xi32> to vector<8x32xi32>
    %15 = arith.cmpi eq, %12, %14 : vector<8x32xi32>
    %cst_5 = arith.constant 0.000000e+00 : f32
    %16 = vector.broadcast %cst_5 : f32 to vector<8x32xf32>
    %17 = arith.select %15, %0, %16 : vector<8x32xi1>, vector<8x32xf32>
    %cst_6 = arith.constant dense<0.000000e+00> : vector<8xf32>
    %18 = vector.multi_reduction <add>, %17, %cst_6 [1] : vector<8x32xf32> to vector<8xf32>
    %19 = vector.shape_cast %18 : vector<8xf32> to vector<8x1xf32>
    %cst_7 = arith.constant 3.200000e+01 : f32
    %20 = vector.broadcast %cst_7 : f32 to vector<8x1xf32>
    %21 = arith.mulf %20, %9 : vector<8x1xf32>
    %22 = arith.subf %21, %11 : vector<8x1xf32>
    %23 = arith.subf %9, %19 : vector<8x1xf32>
    %24 = tpu.iota {dimensions = array<i32: 0>} : vector<8x1xi32>
    %c8_i32 = arith.constant 8 : i32
    %25 = arith.muli %arg0, %c8_i32 : i32
    %26 = vector.broadcast %25 : i32 to vector<8x1xi32>
    %27 = arith.addi %24, %26 : vector<8x1xi32>
    %c8_i32_8 = arith.constant 8 : i32
    %28 = vector.broadcast %c8_i32_8 : i32 to vector<8x1xi32>
    %29 = arith.cmpi slt, %27, %28 : vector<8x1xi32>
    %cst_9 = arith.constant 0.000000e+00 : f32
    %30 = vector.broadcast %cst_9 : f32 to vector<8x1xf32>
    %31 = arith.select %29, %22, %30 : vector<8x1xi1>, vector<8x1xf32>
    %32 = vector.shape_cast %31 : vector<8x1xf32> to vector<1x8x1xf32>
    %cst_10 = arith.constant dense<0.000000e+00> : vector<1xf32>
    %33 = vector.multi_reduction <add>, %32, %cst_10 [1, 2] : vector<1x8x1xf32> to vector<1xf32>
    %34 = vector.shape_cast %33 : vector<1xf32> to vector<1x1x1xf32>
    %35 = vector.extract %34[0, 0, 0] : f32 from vector<1x1x1xf32>
    %cst_11 = arith.constant 0.000000e+00 : f32
    %36 = vector.broadcast %cst_11 : f32 to vector<8x1xf32>
    %37 = arith.select %29, %23, %36 : vector<8x1xi1>, vector<8x1xf32>
    %38 = vector.shape_cast %37 : vector<8x1xf32> to vector<1x8x1xf32>
    %cst_12 = arith.constant dense<0.000000e+00> : vector<1xf32>
    %39 = vector.multi_reduction <add>, %38, %cst_12 [1, 2] : vector<1x8x1xf32> to vector<1xf32>
    %40 = vector.shape_cast %39 : vector<1xf32> to vector<1x1x1xf32>
    %41 = vector.extract %40[0, 0, 0] : f32 from vector<1x1x1xf32>
    %42 = tpu.iota {dimensions = array<i32: 0>} : vector<8x128xi32>
    %c4_i32 = arith.constant 4 : i32
    %43 = vector.broadcast %c4_i32 : i32 to vector<8x128xi32>
    %44 = arith.cmpi slt, %42, %43 : vector<8x128xi32>
    %45 = vector.broadcast %35 : f32 to vector<8x128xf32>
    %46 = vector.broadcast %41 : f32 to vector<8x128xf32>
    %47 = arith.select %44, %45, %46 : vector<8x128xi1>, vector<8x128xf32>
    %c0_13 = arith.constant 0 : index
    %c0_14 = arith.constant 0 : index
    %c0_15 = arith.constant 0 : index
    %48 = vector.load %arg3[%c0_13, %c0_14, %c0_15] : memref<1x8x128xf32, #tpu.memory_space<vmem>>, vector<1x8x128xf32>
    %49 = vector.shape_cast %48 : vector<1x8x128xf32> to vector<8x128xf32>
    %50 = vector.shape_cast %47 : vector<8x128xf32> to vector<1x8x128xf32>
    tpu.vector_store %arg3[%c0_13, %c0_14, %c0_15], %50 {strides = array<i32>} : memref<1x8x128xf32, #tpu.memory_space<vmem>>, vector<1x8x128xf32>,
    return
  }
  func.func @transform_0(%arg0: i32) -> (i32, i32) {
    %c0_i32 = arith.constant 0 : i32
    %c0_i32_0 = arith.constant 0 : i32
    return %arg0, %c0_i32 : i32, i32
  }
  func.func @transform_1(%arg0: i32) -> (i32, i32) {
    %c0_i32 = arith.constant 0 : i32
    %c0_i32_0 = arith.constant 0 : i32
    return %arg0, %c0_i32 : i32, i32
  }
  func.func @transform_2(%arg0: i32) -> (i32, i32, i32) {
    %c0_i32 = arith.constant 0 : i32
    %c0_i32_0 = arith.constant 0 : i32
    %c0_i32_1 = arith.constant 0 : i32
    return %arg0, %c0_i32, %c0_i32_0 : i32, i32, i32
  }
}

</mosaic_0001>

<llo_original>
// kernel: tpu_custom_call.1
$region0: #{tpu_custom_call.1}
  #allocation0 [shape = 'u32[]', space=smem, size = 0x4, offset = 0x4, fixed_abs, tag = 'smem constant byte address 0x4 - core index']
  #allocation1 [shape = 'u32[144,128]{1,0:T(1,128)}', space=vmem, size = 0x12000, scoped, tag = 'internal scratch']
  %s0 = inlined_call_operand.vmem [shape: f32[8,32], index: 0, kind: input, shape index: {}]
  %s1 = inlined_call_operand.vmem [shape: s32[8,1], index: 1, kind: input, shape index: {}]
  %s2 = inlined_call_operand.hbm [shape: f32[1,8,128], index: 2, kind: output, shape index: {}]
  %s3 = sld [smem:[#allocation0]]
  $region18: #{tpu_custom_call.1} parent=0
    _
  %s5 = ssub.s32 1, %s3
  %s6 = scalar_select 0, %s5, %s3
  $region1: #{tpu_custom_call.1} parent=0
    #allocation2 [shape = 'u8[4096]{0}', space=vmem, size = 0x1000, scoped, tag = 'output window, operand 0, single buffered']
    #allocation3 [shape = 's32[1]{0}', space=sflag, size = 0x4, scoped, tag = 'scoped memory for tpu_custom_call.1']
    %7 = vsyncpa [#allocation3], 0
    // Predicated region
    $region2: #{tpu_custom_call.1} parent=1 // pred_check
      _
    $region3: #{tpu_custom_call.1} parent=1 // pred_check_branch
      %9 = sbr.rel (0) target = $region5
    $region4: #{tpu_custom_call.1} parent=1 // pred_region
      _
    $region5: #{tpu_custom_call.1} parent=1 // pred_fallthru
      _
    // Predicated region
    $region6: #{tpu_custom_call.1} parent=1 // pred_check
      _
    $region7: #{tpu_custom_call.1} parent=1 // pred_check_branch
      %11 = sbr.rel (0) target = $region9
    $region8: #{tpu_custom_call.1} parent=1 // pred_region
      _
    $region9: #{tpu_custom_call.1} parent=1 // pred_fallthru
      _
    %v12 = vld [vmem:[%s0] sm:$0xff]
    %vm13 = vcmask 261120
    %v14 = vsel %vm13, %v12, -inf
    %15 = vmax.xlane.f32.xlu0 %v14
    %v16 = vpop.xlane.xlu0 %15
    %v17 = vsub.f32 %v12, %v16
    %v18 = vmul.f32 %v17, 1.442695
    %v19 = vpow.pop %v18
    %v20 = vsel %vm13, %v19, 0.0
    %21 = vadd.xlane.f32.xlu0 %v20
    %v22 = vpop.xlane.xlu0 %21
    %v23 = vlog2.pop %v22
    %v24 = vmul.f32 %v23, 0.6931472
    %v25 = vadd.f32 %v24, %v16
    %v26 = vsel %vm13, %v12, 0.0
    %27 = vadd.xlane.f32.xlu0 %v26
    %v28 = vpop.xlane.xlu0 %27
    %v29 = vlaneseq
    %v30 = vand.u32 %v29, 127
    %v31 = vld [vmem:[%s1] sm:$0xff]
    %32 = vset.pattern.permute.xlu0 0
    %33 = vperm.xlu0 %32, %v31
    %v34 = vpop.permute.xlu0 %33
    %vm35 = vcmp.eq.s32.totalorder %v30, %v34
    %v36 = vsel %vm35, %v12, 0.0
    %v37 = vsel %vm13, %v36, 0.0
    %38 = vadd.xlane.f32.xlu0 %v37
    %v39 = vpop.xlane.xlu0 %38
    %v40 = vmul.f32 %v25, 32.0
    %v41 = vsub.f32 %v40, %v28
    %v42 = vsub.f32 %v25, %v39
    %v43 = vlaneseq
    %v44 = vshrl.u32 %v43, 7
    %s45 = smul.u32 0, 8
    %v46 = vstv %s45
    %v47 = vadd.s32 %v44, %v46
    %vm48 = vcmp.lt.s32.totalorder %v47, 8
    %v49 = vsel %vm48, %v41, 0.0
    %vm50 = vcmask 7168
    %v51 = vsel %vm50, %v49, 0.0
    %52 = vadd.xlane.f32.xlu0 %v51
    %v53 = vpop.xlane.xlu0 %52
    %v54 = vrot.slane %v53, 4
    %v55 = vadd.f32 %v53, %v54
    %v56 = vrot.slane %v55, 2
    %v57 = vadd.f32 %v55, %v56
    %v58 = vrot.slane %v57, 1
    %v59 = vadd.f32 %v57, %v58
    %s60 = vtos %v59
    %v61 = vsel %vm48, %v42, 0.0
    %v62 = vsel %vm50, %v61, 0.0
    %63 = vadd.xlane.f32.xlu0 %v62
    %v64 = vpop.xlane.xlu0 %63
    %v65 = vrot.slane %v64, 4
    %v66 = vadd.f32 %v64, %v65
    %v67 = vrot.slane %v66, 2
    %v68 = vadd.f32 %v66, %v67
    %v69 = vrot.slane %v68, 1
    %v70 = vadd.f32 %v68, %v69
    %s71 = vtos %v70
    %vm72 = vcmp.lt.s32.totalorder %v44, 4
    %v73 = vstv %s60
    %v74 = vstv %s71
    %v75 = vsel %vm72, %v73, %v74
    %76 = vst [vmem:[#allocation2] sm:$0xff] %v75
    // Predicated region
    $region10: #{tpu_custom_call.1} parent=1 // pred_check
      _
    $region11: #{tpu_custom_call.1} parent=1 // pred_check_branch
      %78 = sbr.rel (0) target = $region13
    $region12: #{tpu_custom_call.1} parent=1 // pred_region
      %s80 = ssub.s32 128, 128
      %81 = vsyncadd [#allocation3], %s80
      %s83 = sshll.u32 [#allocation2], 4
      %s84 = int_to_ptr.vmem [resolvable:$true] %s83
      %86 = dma.vmem_to_hbm [thread:$0]  %s84, 128, %s2, [#allocation3]
    $region13: #{tpu_custom_call.1} parent=1 // pred_fallthru
      _
    // Predicated region
    $region14: #{tpu_custom_call.1} parent=1 // pred_check
      _
    $region15: #{tpu_custom_call.1} parent=1 // pred_check_branch
      %88 = sbr.rel (0) target = $region17
    $region16: #{tpu_custom_call.1} parent=1 // pred_region
      %89 = dma.done [#allocation3], 128
    $region17: #{tpu_custom_call.1} parent=1 // pred_fallthru
      _
    %90 = vsyncpa [#allocation3], 1

</llo_original>
